<compile_context>
chip_gen: v5e
topology: v5e:2x2
jax: 0.10.0
libtpu: 0.0.40
codegen_flags: <defaults>
</compile_context>

<pallas_src>
import functools

import jax
import jax.numpy as jnp
from jax.experimental import pallas as pl
from jax.experimental.pallas import tpu as pltpu


def _mlp_kernel(x_ref, w1_ref, b1_ref, w2_ref, b2_ref, o_ref, *, compute_dtype):
    # Both matmuls + bias + ReLU fused, fully VMEM-resident per batch tile.
    # Weights/biases map to block (0, 0) on every grid step -> DMA'd once, resident.
    x = x_ref[...].astype(compute_dtype)                 # in-kernel cast (no extra HBM pass)
    h = jnp.dot(x, w1_ref[...], preferred_element_type=jnp.float32) + b1_ref[...]
    h = jnp.maximum(h, 0.0)                              # ReLU (f32)
    y = jnp.dot(h.astype(compute_dtype), w2_ref[...],
                preferred_element_type=jnp.float32) + b2_ref[...]
    o_ref[...] = y.astype(o_ref.dtype)


def _round_up(n, m):
    return ((n + m - 1) // m) * m


@functools.partial(jax.jit,
                   static_argnames=("block_rows", "compute_dtype", "min_pallas_batch"))
def simple_rl_agent_forward(x, w1, b1, w2, b2, *, block_rows=2048,
                            compute_dtype=jnp.float32, min_pallas_batch=256):
    """x: (B, state_size) -> (B, action_size) f32.

    block_rows: max batch-tile height (multiple of 8). Batch is the only gridded axis
      ("parallel"); weights stay VMEM-resident across all tiles of one pallas_call.
    compute_dtype: jnp.float32 or jnp.bfloat16 matmul-operand dtype (accumulation f32).
    min_pallas_batch: below this batch size, use the XLA-fused jnp path instead.
    """
    B, K = x.shape
    H = w1.shape[1]
    A = w2.shape[1]

    # Small-batch fast path: pallas_call launch overhead dominates; let XLA fuse it.
    if B < min_pallas_batch:
        return (jnp.maximum(jnp.dot(x, w1) + b1, 0.0) @ w2 + b2).astype(jnp.float32)

    # --- Batch tile: multiple of 8 (or the full batch if B < 8), capped so that a
    #     "parallel" grid has >= 2 steps when possible (v7x has 2 TensorCores). ---
    if B < 8:
        tb = B
    else:
        tb = min(_round_up(block_rows, 8),
                 _round_up(pl.cdiv(B, 2), 8),
                 _round_up(B, 8))
    n_blocks = pl.cdiv(B, tb)          # partial final block is masked by Pallas

    # One-time weight/bias casts (tiny: K*H + H*A elements).
    w1c = w1.astype(compute_dtype)
    w2c = w2.astype(compute_dtype)
    b1f = b1.astype(jnp.float32)
    b2f = b2.astype(jnp.float32)

    w_itemsize = jnp.dtype(compute_dtype).itemsize
    cost = pl.CostEstimate(
        flops=2 * B * (K * H + H * A),
        transcendentals=0,
        bytes_accessed=(B * K * x.dtype.itemsize          # x (streamed in stored dtype)
                        + (K * H + H * A) * w_itemsize    # weights (once)
                        + (H + A) * 4                     # biases (f32)
                        + B * A * 4),                     # output (unpadded f32)
    )

    kernel = functools.partial(_mlp_kernel, compute_dtype=compute_dtype)

    return pl.pallas_call(
        kernel,
        out_shape=jax.ShapeDtypeStruct((B, A), jnp.float32),
        grid=(n_blocks,),
        in_specs=[
            pl.BlockSpec((tb, K), lambda i: (i, 0)),   # x: tiled over batch only
            pl.BlockSpec((K, H), lambda i: (0, 0)),    # w1: resident
            pl.BlockSpec((1, H), lambda i: (0, 0)),    # b1: resident
            pl.BlockSpec((H, A), lambda i: (0, 0)),    # w2: resident (A = full dim, no pad)
            pl.BlockSpec((1, A), lambda i: (0, 0)),    # b2: resident
        ],
        out_specs=pl.BlockSpec((tb, A), lambda i: (i, 0)),   # unpadded A; no post-slice
        compiler_params=pltpu.CompilerParams(
            dimension_semantics=("parallel",)),        # v7x: both TCs split the grid
        cost_estimate=cost,
    )(x, w1c, b1f, w2c, b2f)


def init_params(key, state_size, action_size, hidden=64):
    # Deterministic init mirroring PyTorch nn.Linear default: U(-1/sqrt(fan_in), 1/sqrt(fan_in)).
    k1, k2, k3, k4 = jax.random.split(key, 4)
    bound1 = 1.0 / (state_size ** 0.5)
    bound2 = 1.0 / (hidden ** 0.5)
    w1 = jax.random.uniform(k1, (state_size, hidden), jnp.float32, -bound1, bound1)
    b1 = jax.random.uniform(k2, (1, hidden), jnp.float32, -bound1, bound1)
    w2 = jax.random.uniform(k3, (hidden, action_size), jnp.float32, -bound2, bound2)
    b2 = jax.random.uniform(k4, (1, action_size), jnp.float32, -bound2, bound2)
    return w1, b1, w2, b2


if __name__ == "__main__":
    state_size = 16
    action_size = 4

    key = jax.random.PRNGKey(0)
    k_x, k_x2, k_p = jax.random.split(key, 3)
    w1, b1, w2, b2 = init_params(k_p, state_size, action_size)

    def ref_forward(xx):
        return jnp.maximum(xx @ w1 + b1, 0.0) @ w2 + b2

    # (a) Small batch, forced through the Pallas kernel (f32 operands -> tight check).
    x_small = jax.random.normal(k_x, (8, state_size), jnp.float32)
    out = simple_rl_agent_forward(x_small, w1, b1, w2, b2, min_pallas_batch=0)
    out = jax.block_until_ready(out)
    assert out.shape == (8, action_size)
    assert jnp.allclose(out, ref_forward(x_small), atol=1e-5, rtol=1e-5)

    # (b) Larger batch: Pallas path with a multi-step "parallel" grid and a partial
    #     final block (masked output stores, no wrapper padding/slicing).
    x_big = jax.random.normal(k_x2, (1000, state_size), jnp.float32)
    out_big = jax.block_until_ready(simple_rl_agent_forward(x_big, w1, b1, w2, b2))
    assert out_big.shape == (1000, action_size)
    assert jnp.allclose(out_big, ref_forward(x_big), atol=1e-4, rtol=1e-4)

    # (c) bf16 operand path (in-kernel cast, f32 accumulation) -> loose check.
    out_bf16 = jax.block_until_ready(
        simple_rl_agent_forward(x_big, w1, b1, w2, b2, compute_dtype=jnp.bfloat16))
    assert out_bf16.shape == (1000, action_size)
    assert jnp.allclose(out_bf16, ref_forward(x_big), atol=5e-2, rtol=5e-2)

    print("KERNEL_OK")
</pallas_src>

<mosaic_0001>
module attributes {stable_mosaic.version = 11 : i64} {
  func.func @_mlp_kernel(%arg0: i32, %arg1: memref<8x16xf32, #tpu.memory_space<vmem>>, %arg2: memref<16x64xf32, #tpu.memory_space<vmem>>, %arg3: memref<1x64xf32, #tpu.memory_space<vmem>>, %arg4: memref<64x4xf32, #tpu.memory_space<vmem>>, %arg5: memref<1x4xf32, #tpu.memory_space<vmem>>, %arg6: memref<8x4xf32, #tpu.memory_space<vmem>>) attributes {dimension_semantics = [#tpu.dimension_semantics<parallel>], iteration_bounds = array<i64: 1>, scalar_prefetch = 0 : i64, scratch_operands = 0 : i64, tpu.core_type = #tpu.core_type<tc>, window_params = [{transform_indices = @transform_0, window_bounds = array<i64: 8, 16>}, {pipeline_mode = #tpu.pipeline_mode<synchronous>, transform_indices = @transform_1, window_bounds = array<i64: 16, 64>}, {pipeline_mode = #tpu.pipeline_mode<synchronous>, transform_indices = @transform_2, window_bounds = array<i64: 1, 64>}, {pipeline_mode = #tpu.pipeline_mode<synchronous>, transform_indices = @transform_3, window_bounds = array<i64: 64, 4>}, {pipeline_mode = #tpu.pipeline_mode<synchronous>, transform_indices = @transform_4, window_bounds = array<i64: 1, 4>}, {transform_indices = @transform_5, window_bounds = array<i64: 8, 4>}]} {
    %c0 = arith.constant 0 : index
    %c0_0 = arith.constant 0 : index
    %0 = vector.load %arg1[%c0, %c0_0] : memref<8x16xf32, #tpu.memory_space<vmem>>, vector<8x16xf32>
    %c0_1 = arith.constant 0 : index
    %c0_2 = arith.constant 0 : index
    %1 = vector.load %arg2[%c0_1, %c0_2] : memref<16x64xf32, #tpu.memory_space<vmem>>, vector<16x64xf32>
    %cst = arith.constant dense<0.000000e+00> : vector<8x64xf32>
    %2 = tpu.matmul %0, %1, %cst {dimension_numbers = #tpu.dot_dimension_numbers<[1], [0], [0], [1], [0, 0, 1, 1], [], []>} : vector<8x16xf32>, vector<16x64xf32>, vector<8x64xf32> -> vector<8x64xf32>
    %c0_3 = arith.constant 0 : index
    %c0_4 = arith.constant 0 : index
    %3 = vector.load %arg3[%c0_3, %c0_4] : memref<1x64xf32, #tpu.memory_space<vmem>>, vector<1x64xf32>
    %4 = vector.broadcast %3 : vector<1x64xf32> to vector<8x64xf32>
    %5 = arith.addf %2, %4 : vector<8x64xf32>
    %cst_5 = arith.constant 0.000000e+00 : f32
    %6 = vector.broadcast %cst_5 : f32 to vector<8x64xf32>
    %7 = arith.maximumf %5, %6 : vector<8x64xf32>
    %c0_6 = arith.constant 0 : index
    %c0_7 = arith.constant 0 : index
    %8 = vector.load %arg4[%c0_6, %c0_7] : memref<64x4xf32, #tpu.memory_space<vmem>>, vector<64x4xf32>
    %cst_8 = arith.constant dense<0.000000e+00> : vector<8x4xf32>
    %9 = tpu.matmul %7, %8, %cst_8 {dimension_numbers = #tpu.dot_dimension_numbers<[1], [0], [0], [1], [0, 0, 1, 1], [], []>} : vector<8x64xf32>, vector<64x4xf32>, vector<8x4xf32> -> vector<8x4xf32>
    %c0_9 = arith.constant 0 : index
    %c0_10 = arith.constant 0 : index
    %10 = vector.load %arg5[%c0_9, %c0_10] : memref<1x4xf32, #tpu.memory_space<vmem>>, vector<1x4xf32>
    %11 = vector.broadcast %10 : vector<1x4xf32> to vector<8x4xf32>
    %12 = arith.addf %9, %11 : vector<8x4xf32>
    %c0_11 = arith.constant 0 : index
    %c0_12 = arith.constant 0 : index
    %13 = vector.load %arg6[%c0_11, %c0_12] : memref<8x4xf32, #tpu.memory_space<vmem>>, vector<8x4xf32>
    tpu.vector_store %arg6[%c0_11, %c0_12], %12 {strides = array<i32>} : memref<8x4xf32, #tpu.memory_space<vmem>>, vector<8x4xf32>,
    return
  }
  func.func @transform_0(%arg0: i32) -> (i32, i32) {
    %c0_i32 = arith.constant 0 : i32
    %c0_i32_0 = arith.constant 0 : i32
    return %arg0, %c0_i32 : i32, i32
  }
  func.func @transform_1(%arg0: i32) -> (i32, i32) {
    %c0_i32 = arith.constant 0 : i32
    %c0_i32_0 = arith.constant 0 : i32
    %c0_i32_1 = arith.constant 0 : i32
    return %c0_i32, %c0_i32_0 : i32, i32
  }
  func.func @transform_2(%arg0: i32) -> (i32, i32) {
    %c0_i32 = arith.constant 0 : i32
    %c0_i32_0 = arith.constant 0 : i32
    %c0_i32_1 = arith.constant 0 : i32
    return %c0_i32, %c0_i32_0 : i32, i32
  }
  func.func @transform_3(%arg0: i32) -> (i32, i32) {
    %c0_i32 = arith.constant 0 : i32
    %c0_i32_0 = arith.constant 0 : i32
    %c0_i32_1 = arith.constant 0 : i32
    return %c0_i32, %c0_i32_0 : i32, i32
  }
  func.func @transform_4(%arg0: i32) -> (i32, i32) {
    %c0_i32 = arith.constant 0 : i32
    %c0_i32_0 = arith.constant 0 : i32
    %c0_i32_1 = arith.constant 0 : i32
    return %c0_i32, %c0_i32_0 : i32, i32
  }
  func.func @transform_5(%arg0: i32) -> (i32, i32) {
    %c0_i32 = arith.constant 0 : i32
    %c0_i32_0 = arith.constant 0 : i32
    return %arg0, %c0_i32 : i32, i32
  }
}

</mosaic_0001>

<llo_original>
// kernel: simple_rl_agent_forward.1
$region0: #{simple_rl_agent_forward.1}
  #allocation0 [shape = 'u32[]', space=smem, size = 0x4, offset = 0x4, fixed_abs, tag = 'smem constant byte address 0x4 - core index']
  #allocation1 [shape = 'u32[72,128]{1,0:T(1,128)}', space=vmem, size = 0x9000, scoped, tag = 'internal scratch']
  %s0 = inlined_call_operand.vmem [shape: f32[8,16], index: 0, kind: input, shape index: {}]
  %s1 = inlined_call_operand.vmem [shape: f32[16,64], index: 1, kind: input, shape index: {}]
  %s2 = inlined_call_operand.vmem [shape: f32[1,64], index: 2, kind: input, shape index: {}]
  %s3 = inlined_call_operand.vmem [shape: f32[64,4], index: 3, kind: input, shape index: {}]
  %s4 = inlined_call_operand.vmem [shape: f32[1,4], index: 4, kind: input, shape index: {}]
  %s5 = inlined_call_operand.vmem [shape: f32[8,4], index: 5, kind: output, shape index: {}]
  %s6 = sld [smem:[#allocation0]]
  $region30: #{simple_rl_agent_forward.1} parent=0
    _
  %s8 = ssub.s32 1, %s6
  %s9 = scalar_select 0, %s8, %s6
  // Predicated region
  $region2: #{simple_rl_agent_forward.1} parent=0 // pred_check
    _
  $region3: #{simple_rl_agent_forward.1} parent=0 // pred_check_branch
    %11 = sbr.rel (0) target = $region5
  $region4: #{simple_rl_agent_forward.1} parent=0 // pred_region
    _
  $region5: #{simple_rl_agent_forward.1} parent=0 // pred_fallthru
    _
  // Predicated region
  $region6: #{simple_rl_agent_forward.1} parent=0 // pred_check
    _
  $region7: #{simple_rl_agent_forward.1} parent=0 // pred_check_branch
    %13 = sbr.rel (0) target = $region9
  $region8: #{simple_rl_agent_forward.1} parent=0 // pred_region
    _
  $region9: #{simple_rl_agent_forward.1} parent=0 // pred_fallthru
    _
  // Predicated region
  $region10: #{simple_rl_agent_forward.1} parent=0 // pred_check
    _
  $region11: #{simple_rl_agent_forward.1} parent=0 // pred_check_branch
    %15 = sbr.rel (0) target = $region13
  $region12: #{simple_rl_agent_forward.1} parent=0 // pred_region
    _
  $region13: #{simple_rl_agent_forward.1} parent=0 // pred_fallthru
    _
  // Predicated region
  $region14: #{simple_rl_agent_forward.1} parent=0 // pred_check
    _
  $region15: #{simple_rl_agent_forward.1} parent=0 // pred_check_branch
    %17 = sbr.rel (0) target = $region17
  $region16: #{simple_rl_agent_forward.1} parent=0 // pred_region
    _
  $region17: #{simple_rl_agent_forward.1} parent=0 // pred_fallthru
    _
  // Predicated region
  $region18: #{simple_rl_agent_forward.1} parent=0 // pred_check
    _
  $region19: #{simple_rl_agent_forward.1} parent=0 // pred_check_branch
    %19 = sbr.rel (0) target = $region21
  $region20: #{simple_rl_agent_forward.1} parent=0 // pred_region
    _
  $region21: #{simple_rl_agent_forward.1} parent=0 // pred_fallthru
    _
  %v20 = vld [vmem:[%s0] sm:$0xff]
  %v21 = vld [vmem:[%s1] sm:$0xff]
  %v22 = vld [vmem:[%s1 + $0x8] sm:$0xff]
  %v23 = vld [vmem:[%s2] sm:$0x1]
  %v25 = vperm.slane %v23, 0
  %vm27 = vcmask 130048
  %v29 = vsel %vm27, %v20, 0
  %31 = vmatpush.msra.mxu0 0.0
  %32 = vmatpush.msra.mxu0 0.0
  %33 = vmatpush.msra.mxu0 0.0
  %34 = vmatpush.msra.mxu0 0.0
  %35 = vmatpush.msra.mxu0 0.0
  %36 = vmatpush.msra.mxu0 0.0
  %37 = vmatpush.msra.mxu0 0.0
  %38 = vmatpush.msra.mxu0 0.0
  %39 = vmatpush.msra.mxu0 0.0
  %40 = vmatpush.msra.mxu0 0.0
  %41 = vmatpush.msra.mxu0 0.0
  %42 = vmatpush.msra.mxu0 0.0
  %43 = vmatpush.msra.mxu0 0.0
  %44 = vmatpush.msra.mxu0 0.0
  %45 = vmatpush.msra.mxu0 %v22
  %46 = vmatpush.msra.mxu0 %v21
  %47 = vmatmul.f32.gmra.mxu0 %v29
  %v48 = vpop.f32.mrf.mxu0
  %v49 = vadd.f32 %v25, %v48
  %50 = vdwg.mxu0
  %v51 = vmax.f32 %v49, 0.0
  %v52 = vld [vmem:[%s3] sm:$0xff]
  %v53 = vld [vmem:[%s3 + $0x8] sm:$0xff]
  %v54 = vld [vmem:[%s3 + $0x10] sm:$0xff]
  %v55 = vld [vmem:[%s3 + $0x18] sm:$0xff]
  %v56 = vld [vmem:[%s3 + $0x20] sm:$0xff]
  %v57 = vld [vmem:[%s3 + $0x28] sm:$0xff]
  %v58 = vld [vmem:[%s3 + $0x30] sm:$0xff]
  %v59 = vld [vmem:[%s3 + $0x38] sm:$0xff]
  %v60 = vld [vmem:[%s4] sm:$0x1]
  %v62 = vperm.slane %v60, 0
  %vm64 = vcmask 523264
  %v66 = vsel %vm64, %v51, 0
  %68 = vmatpush.msra.mxu0 0.0
  %69 = vmatpush.msra.mxu0 0.0
  %70 = vmatpush.msra.mxu0 0.0
  %71 = vmatpush.msra.mxu0 0.0
  %72 = vmatpush.msra.mxu0 0.0
  %73 = vmatpush.msra.mxu0 0.0
  %74 = vmatpush.msra.mxu0 0.0
  %75 = vmatpush.msra.mxu0 0.0
  %76 = vmatpush.msra.mxu0 %v59
  %77 = vmatpush.msra.mxu0 %v58
  %78 = vmatpush.msra.mxu0 %v57
  %79 = vmatpush.msra.mxu0 %v56
  %80 = vmatpush.msra.mxu0 %v55
  %81 = vmatpush.msra.mxu0 %v54
  %82 = vmatpush.msra.mxu0 %v53
  %83 = vmatpush.msra.mxu0 %v52
  %84 = vmatmul.f32.gmra.mxu0 %v66
  %v85 = vpop.f32.mrf.mxu0
  %v86 = vadd.f32 %v62, %v85
  %87 = vdwg.mxu0
  %vm88 = vcmask 31744
  %89 = vst.msk [vmem:[%s5] sm:$0xff] %vm88, %v86
  // Predicated region
  $region22: #{simple_rl_agent_forward.1} parent=0 // pred_check
    _
  $region23: #{simple_rl_agent_forward.1} parent=0 // pred_check_branch
    %91 = sbr.rel (0) target = $region25
  $region24: #{simple_rl_agent_forward.1} parent=0 // pred_region
    _
  $region25: #{simple_rl_agent_forward.1} parent=0 // pred_fallthru
    _
  // Predicated region
  $region26: #{simple_rl_agent_forward.1} parent=0 // pred_check
    _
  $region27: #{simple_rl_agent_forward.1} parent=0 // pred_check_branch
    %93 = sbr.rel (0) target = $region29
  $region28: #{simple_rl_agent_forward.1} parent=0 // pred_region
    _
  $region29: #{simple_rl_agent_forward.1} parent=0 // pred_fallthru
    _

</llo_original>
